<compile_context>
chip_gen: v5e
topology: v5e:2x2
jax: 0.10.0
libtpu: 0.0.40
codegen_flags: <defaults>
</compile_context>

<pallas_src>
import functools

import jax
import jax.numpy as jnp
import numpy as np
from jax.experimental import pallas as pl
from jax.experimental.pallas import tpu as pltpu


def _sobel_loss_kernel(pred_ref, tgt_ref, out_ref, dpad_ref, acc_ref, *,
                       inv_count, n, tn, h, w):
    """One grid step processes up to `tn` images.

    pred_ref/tgt_ref: (tn, H, W) blocks in the input's native dtype.
    dpad_ref: VMEM (tn, H+2, W+2) f32 zero-halo workspace for the difference.
    acc_ref : VMEM (H, W) f32 element-wise accumulator of squared gradients.
    out_ref : SMEM (1,) f32 final scalar loss.
    """
    i = pl.program_id(0)

    @pl.when(i == 0)
    def _():
        # Zero once: the 1-pixel halo stays zero for all steps; the interior
        # is fully overwritten every step.
        dpad_ref[...] = jnp.zeros_like(dpad_ref)
        acc_ref[...] = jnp.zeros_like(acc_ref)

    # Cast after load (inputs may be bf16/fp16); Sobel (conv) is linear, so it
    # is applied once to the difference.
    d = pred_ref[...].astype(jnp.float32) - tgt_ref[...].astype(jnp.float32)

    if n % tn:
        # Ragged tail block: zero out-of-range batch rows (select, so any
        # stale/NaN padding data cannot leak into the sum).
        b_idx = jax.lax.broadcasted_iota(jnp.int32, d.shape, 0)
        d = jnp.where(b_idx < n - i * tn, d, 0.0)

    dpad_ref[:, 1:h + 1, 1:w + 1] = d                    # interior only

    # Separable Sobel on the zero-padded difference (shapes (tn, H, W+2)).
    top = dpad_ref[:, 0:h, :]
    mid = dpad_ref[:, 1:h + 1, :]
    bot = dpad_ref[:, 2:h + 2, :]
    r = top + 2.0 * mid + bot                            # vertical [1, 2, 1]
    v = bot - top                                        # vertical [-1, 0, 1]

    # Horizontal pass (all shapes (tn, H, W)).
    gx = r[:, :, 2:] - r[:, :, 0:w]                      # horizontal [-1, 0, 1]
    gy = v[:, :, 0:w] + 2.0 * v[:, :, 1:w + 1] + v[:, :, 2:]   # [1, 2, 1]

    # Reduce only over the leading (batch) dim -> pure VPU adds, no XLU.
    acc_ref[...] += jnp.sum(gx * gx + gy * gy, axis=0)

    @pl.when(i == pl.num_programs(0) - 1)
    def _():
        # Single cross-lane reduction + mean scaling, once at the end.
        out_ref[0] = jnp.sum(acc_ref[...]) * inv_count


def _round_up(x, m):
    return (x + m - 1) // m * m


def sobel_loss(predicted, target, *, max_block_bytes=None):
    """predicted, target: float arrays of shape (N, 1, H, W). Returns scalar."""
    assert predicted.shape == target.shape
    n, c, h, w = predicted.shape
    assert c == 1, "sobel_filter in the reference requires a single channel"

    pred = predicted.reshape(n, h, w)        # no dtype cast: stream native bytes
    tgt = target.reshape(n, h, w)
    in_bytes = pred.dtype.itemsize

    # ---- generation-aware VMEM budget -> batch tile tn ---------------------
    vmem_cap = 64 * 1024 * 1024              # conservative fallback (v7x-sized)
    try:
        info = pltpu.get_tpu_info()
        vmem_cap = int(getattr(info, "vmem_capacity_bytes", vmem_cap))
    except Exception:
        pass
    budget = int(vmem_cap * 0.70)            # headroom for compiler temporaries

    # Padded (tile-aligned) per-image VMEM footprints.
    sub_in = max(8, 32 // max(1, in_bytes))  # sublane tile for the input dtype
    plane_in_pad = _round_up(h, sub_in) * _round_up(w, 128) * in_bytes
    plane_f32_pad = _round_up(h, 8) * _round_up(w, 128) * 4
    dpad_plane = _round_up(h + 2, 8) * _round_up(w + 2, 128) * 4

    # 2 inputs x 2 pipeline buffers + halo scratch + ~6 live f32 value temps.
    per_img = 4 * plane_in_pad + dpad_plane + 6 * plane_f32_pad
    tn_budget = max(1, (budget - plane_f32_pad) // per_img)
    # ~4 MiB-class input blocks: big enough to amortize per-step overhead
    # (~85%+ of HBM roofline), small enough to keep the vector program sane.
    block_cap = max_block_bytes if max_block_bytes is not None else 4 * 1024 * 1024
    tn_block = max(1, block_cap // plane_in_pad)
    tn = int(max(1, min(n, tn_budget, tn_block)))
    grid = (pl.cdiv(n, tn),)

    inv_count = 1.0 / float(n * c * h * w)
    vmem_limit = int(max(32 * 1024 * 1024,
                         min(int(vmem_cap * 0.90), 128 * 1024 * 1024)))

    kernel = functools.partial(_sobel_loss_kernel, inv_count=inv_count,
                               n=n, tn=tn, h=h, w=w)

    out = pl.pallas_call(
        kernel,
        out_shape=jax.ShapeDtypeStruct((1,), jnp.float32),
        grid_spec=pltpu.PrefetchScalarGridSpec(
            num_scalar_prefetch=0,
            grid=grid,
            in_specs=[
                pl.BlockSpec((tn, h, w), lambda i: (i, 0, 0)),
                pl.BlockSpec((tn, h, w), lambda i: (i, 0, 0)),
            ],
            out_specs=pl.BlockSpec(memory_space=pltpu.SMEM),
            scratch_shapes=[
                pltpu.VMEM((tn, h + 2, w + 2), jnp.float32),
                pltpu.VMEM((h, w), jnp.float32),
            ],
        ),
        compiler_params=pltpu.CompilerParams(
            dimension_semantics=("arbitrary",),
            vmem_limit_bytes=vmem_limit,
        ),
    )(pred, tgt)
    return out[0]


def _sobel_loss_ref(predicted, target):
    """Pure-JAX reference (direct 3x3 cross-correlation, padding=1)."""
    kx = jnp.array([[-1, 0, 1], [-2, 0, 2], [-1, 0, 1]], jnp.float32)
    ky = jnp.array([[-1, -2, -1], [0, 0, 0], [1, 2, 1]], jnp.float32)

    def conv(x, k):
        h, w = x.shape[2], x.shape[3]
        xp = jnp.pad(x[:, 0].astype(jnp.float32), ((0, 0), (1, 1), (1, 1)))
        out = jnp.zeros((x.shape[0], h, w), jnp.float32)
        for di in range(3):
            for dj in range(3):
                out = out + k[di, dj] * xp[:, di:di + h, dj:dj + w]
        return out

    dgx = conv(predicted, kx) - conv(target, kx)
    dgy = conv(predicted, ky) - conv(target, ky)
    return jnp.mean(dgx ** 2 + dgy ** 2)


if __name__ == "__main__":
    key = jax.random.PRNGKey(0)
    k1, k2 = jax.random.split(key)

    # Canonical small shape.
    N, C, H, W = 2, 1, 16, 16
    predicted = jax.random.normal(k1, (N, C, H, W), dtype=jnp.float32)
    target = jax.random.normal(k2, (N, C, H, W), dtype=jnp.float32)
    loss = sobel_loss(predicted, target)
    jax.block_until_ready(loss)
    ref = _sobel_loss_ref(predicted, target)
    np.testing.assert_allclose(np.asarray(loss), np.asarray(ref),
                               rtol=1e-5, atol=1e-5)

    # Exercise the multi-step accumulation + ragged-tail path
    # (force a small block: tn=2 for N=5 -> grid=3 with a 1-image tail).
    N2 = 5
    p2 = jax.random.normal(k1, (N2, C, H, W), dtype=jnp.float32)
    t2 = jax.random.normal(k2, (N2, C, H, W), dtype=jnp.float32)
    loss2 = sobel_loss(p2, t2, max_block_bytes=2 * 16 * 128 * 4)
    jax.block_until_ready(loss2)
    ref2 = _sobel_loss_ref(p2, t2)
    np.testing.assert_allclose(np.asarray(loss2), np.asarray(ref2),
                               rtol=1e-5, atol=1e-5)

    print("KERNEL_OK")
</pallas_src>

<mosaic_0001>
module attributes {stable_mosaic.version = 11 : i64} {
  func.func @_sobel_loss_kernel(%arg0: i32, %arg1: memref<2x16x16xf32, #tpu.memory_space<vmem>>, %arg2: memref<2x16x16xf32, #tpu.memory_space<vmem>>, %arg3: memref<1xf32, #tpu.memory_space<smem>>, %arg4: memref<2x18x18xf32, #tpu.memory_space<vmem>>, %arg5: memref<16x16xf32, #tpu.memory_space<vmem>>) attributes {dimension_semantics = [#tpu.dimension_semantics<arbitrary>], iteration_bounds = array<i64: 1>, scalar_prefetch = 0 : i64, scratch_operands = 2 : i64, tpu.core_type = #tpu.core_type<tc>, window_params = [{transform_indices = @transform_0, window_bounds = array<i64: 2, 16, 16>}, {transform_indices = @transform_1, window_bounds = array<i64: 2, 16, 16>}, {transform_indices = @transform_2, window_bounds = array<i64: 1>}]} {
    %c0_i32 = arith.constant 0 : i32
    %0 = arith.cmpi eq, %arg0, %c0_i32 : i32
    %1 = arith.extui %0 : i1 to i32
    %c0_i32_0 = arith.constant 0 : i32
    %2 = arith.cmpi ne, %1, %c0_i32_0 : i32
    scf.if %2 {
      %cst_24 = arith.constant 0.000000e+00 : f32
      %35 = vector.broadcast %cst_24 : f32 to vector<2x18x18xf32>
      %c0_25 = arith.constant 0 : index
      %c0_26 = arith.constant 0 : index
      %c0_27 = arith.constant 0 : index
      %36 = vector.load %arg4[%c0_25, %c0_26, %c0_27] : memref<2x18x18xf32, #tpu.memory_space<vmem>>, vector<2x18x18xf32>
      tpu.vector_store %arg4[%c0_25, %c0_26, %c0_27], %35 {strides = array<i32>} : memref<2x18x18xf32, #tpu.memory_space<vmem>>, vector<2x18x18xf32>,
      %cst_28 = arith.constant 0.000000e+00 : f32
      %37 = vector.broadcast %cst_28 : f32 to vector<16x16xf32>
      %c0_29 = arith.constant 0 : index
      %c0_30 = arith.constant 0 : index
      %38 = vector.load %arg5[%c0_29, %c0_30] : memref<16x16xf32, #tpu.memory_space<vmem>>, vector<16x16xf32>
      tpu.vector_store %arg5[%c0_29, %c0_30], %37 {strides = array<i32>} : memref<16x16xf32, #tpu.memory_space<vmem>>, vector<16x16xf32>,
    } else {
    }
    %c0 = arith.constant 0 : index
    %c0_1 = arith.constant 0 : index
    %c0_2 = arith.constant 0 : index
    %3 = vector.load %arg1[%c0, %c0_1, %c0_2] : memref<2x16x16xf32, #tpu.memory_space<vmem>>, vector<2x16x16xf32>
    %c0_3 = arith.constant 0 : index
    %c0_4 = arith.constant 0 : index
    %c0_5 = arith.constant 0 : index
    %4 = vector.load %arg2[%c0_3, %c0_4, %c0_5] : memref<2x16x16xf32, #tpu.memory_space<vmem>>, vector<2x16x16xf32>
    %5 = arith.subf %3, %4 : vector<2x16x16xf32>
    %c0_6 = arith.constant 0 : index
    %c1 = arith.constant 1 : index
    %c1_7 = arith.constant 1 : index
    %6 = vector.load %arg4[%c0_6, %c1, %c1_7] : memref<2x18x18xf32, #tpu.memory_space<vmem>>, vector<2x16x16xf32>
    tpu.vector_store %arg4[%c0_6, %c1, %c1_7], %5 {strides = array<i32>} : memref<2x18x18xf32, #tpu.memory_space<vmem>>, vector<2x16x16xf32>,
    %c0_8 = arith.constant 0 : index
    %c0_9 = arith.constant 0 : index
    %c0_10 = arith.constant 0 : index
    %7 = vector.load %arg4[%c0_8, %c0_9, %c0_10] : memref<2x18x18xf32, #tpu.memory_space<vmem>>, vector<2x16x18xf32>
    %c0_11 = arith.constant 0 : index
    %c1_12 = arith.constant 1 : index
    %c0_13 = arith.constant 0 : index
    %8 = vector.load %arg4[%c0_11, %c1_12, %c0_13] : memref<2x18x18xf32, #tpu.memory_space<vmem>>, vector<2x16x18xf32>
    %c0_14 = arith.constant 0 : index
    %c2 = arith.constant 2 : index
    %c0_15 = arith.constant 0 : index
    %9 = vector.load %arg4[%c0_14, %c2, %c0_15] : memref<2x18x18xf32, #tpu.memory_space<vmem>>, vector<2x16x18xf32>
    %cst = arith.constant 2.000000e+00 : f32
    %10 = vector.broadcast %cst : f32 to vector<2x16x18xf32>
    %11 = arith.mulf %10, %8 : vector<2x16x18xf32>
    %12 = arith.addf %7, %11 : vector<2x16x18xf32>
    %13 = arith.addf %12, %9 : vector<2x16x18xf32>
    %14 = arith.subf %9, %7 : vector<2x16x18xf32>
    %15 = vector.extract_strided_slice %13 {offsets = [0, 0, 2], sizes = [2, 16, 16], strides = [1, 1, 1]} : vector<2x16x18xf32> to vector<2x16x16xf32>
    %16 = vector.extract_strided_slice %13 {offsets = [0, 0, 0], sizes = [2, 16, 16], strides = [1, 1, 1]} : vector<2x16x18xf32> to vector<2x16x16xf32>
    %17 = arith.subf %15, %16 : vector<2x16x16xf32>
    %18 = vector.extract_strided_slice %14 {offsets = [0, 0, 0], sizes = [2, 16, 16], strides = [1, 1, 1]} : vector<2x16x18xf32> to vector<2x16x16xf32>
    %19 = vector.extract_strided_slice %14 {offsets = [0, 0, 1], sizes = [2, 16, 16], strides = [1, 1, 1]} : vector<2x16x18xf32> to vector<2x16x16xf32>
    %cst_16 = arith.constant 2.000000e+00 : f32
    %20 = vector.broadcast %cst_16 : f32 to vector<2x16x16xf32>
    %21 = arith.mulf %20, %19 : vector<2x16x16xf32>
    %22 = arith.addf %18, %21 : vector<2x16x16xf32>
    %23 = vector.extract_strided_slice %14 {offsets = [0, 0, 2], sizes = [2, 16, 16], strides = [1, 1, 1]} : vector<2x16x18xf32> to vector<2x16x16xf32>
    %24 = arith.addf %22, %23 : vector<2x16x16xf32>
    %c0_17 = arith.constant 0 : index
    %c0_18 = arith.constant 0 : index
    %25 = vector.load %arg5[%c0_17, %c0_18] : memref<16x16xf32, #tpu.memory_space<vmem>>, vector<16x16xf32>
    %26 = arith.mulf %17, %17 : vector<2x16x16xf32>
    %27 = arith.mulf %24, %24 : vector<2x16x16xf32>
    %28 = arith.addf %26, %27 : vector<2x16x16xf32>
    %cst_19 = arith.constant dense<0.000000e+00> : vector<16x16xf32>
    %29 = vector.multi_reduction <add>, %28, %cst_19 [0] : vector<2x16x16xf32> to vector<16x16xf32>
    %30 = arith.addf %25, %29 : vector<16x16xf32>
    %c0_20 = arith.constant 0 : index
    %c0_21 = arith.constant 0 : index
    %31 = vector.load %arg5[%c0_20, %c0_21] : memref<16x16xf32, #tpu.memory_space<vmem>>, vector<16x16xf32>
    tpu.vector_store %arg5[%c0_20, %c0_21], %30 {strides = array<i32>} : memref<16x16xf32, #tpu.memory_space<vmem>>, vector<16x16xf32>,
    %c0_i32_22 = arith.constant 0 : i32
    %32 = arith.cmpi eq, %arg0, %c0_i32_22 : i32
    %33 = arith.extui %32 : i1 to i32
    %c0_i32_23 = arith.constant 0 : i32
    %34 = arith.cmpi ne, %33, %c0_i32_23 : i32
    scf.if %34 {
      %c0_24 = arith.constant 0 : index
      %c0_25 = arith.constant 0 : index
      %35 = vector.load %arg5[%c0_24, %c0_25] : memref<16x16xf32, #tpu.memory_space<vmem>>, vector<16x16xf32>
      %36 = vector.shape_cast %35 : vector<16x16xf32> to vector<1x16x16xf32>
      %cst_26 = arith.constant dense<0.000000e+00> : vector<1xf32>
      %37 = vector.multi_reduction <add>, %36, %cst_26 [1, 2] : vector<1x16x16xf32> to vector<1xf32>
      %38 = vector.shape_cast %37 : vector<1xf32> to vector<1x1x1xf32>
      %39 = vector.extract %38[0, 0, 0] : f32 from vector<1x1x1xf32>
      %cst_27 = arith.constant 0.001953125 : f32
      %40 = arith.mulf %39, %cst_27 : f32
      %c0_28 = arith.constant 0 : index
      %41 = memref.load %arg3[%c0_28] : memref<1xf32, #tpu.memory_space<smem>>
      memref.store %40, %arg3[%c0_28] : memref<1xf32, #tpu.memory_space<smem>>
    } else {
    }
    return
  }
  func.func @transform_0(%arg0: i32) -> (i32, i32, i32) {
    %c0_i32 = arith.constant 0 : i32
    %c0_i32_0 = arith.constant 0 : i32
    %c0_i32_1 = arith.constant 0 : i32
    return %arg0, %c0_i32, %c0_i32_0 : i32, i32, i32
  }
  func.func @transform_1(%arg0: i32) -> (i32, i32, i32) {
    %c0_i32 = arith.constant 0 : i32
    %c0_i32_0 = arith.constant 0 : i32
    %c0_i32_1 = arith.constant 0 : i32
    return %arg0, %c0_i32, %c0_i32_0 : i32, i32, i32
  }
  func.func @transform_2(%arg0: i32) -> i32 {
    %c0_i32 = arith.constant 0 : i32
    %c0_i32_0 = arith.constant 0 : i32
    return %c0_i32 : i32
  }
}

</mosaic_0001>

<llo_original>
// kernel: tpu_custom_call.1
$region0: #{tpu_custom_call.1}
  #allocation0 [shape = 'u32[]', space=smem, size = 0x4, offset = 0x4, fixed_abs, tag = 'smem constant byte address 0x4 - core index']
  #allocation1 [shape = 'u32[72,128]{1,0:T(1,128)}', space=vmem, size = 0x9000, scoped, tag = 'internal scratch']
  #allocation2 [shape = 'f32[2,18,18]{2,1,0:T(8,128)}', space=vmem, size = 0x6000, scoped, tag = 'scratch operand']
  #allocation3 [shape = 'f32[16,16]{1,0:T(8,128)}', space=vmem, size = 0x2000, scoped, tag = 'scratch operand']
  %s0 = inlined_call_operand.hbm [shape: f32[2,16,16], index: 0, kind: input, shape index: {}]
  %s1 = inlined_call_operand.hbm [shape: f32[2,16,16], index: 1, kind: input, shape index: {}]
  %s2 = inlined_call_operand.hbm [shape: f32[1], index: 2, kind: output, shape index: {}]
  %s3 = sld [smem:[#allocation0]]
  $region34: #{tpu_custom_call.1} parent=0
    _
  %s5 = ssub.s32 1, %s3
  %s6 = scalar_select 0, %s5, %s3
  $region1: #{tpu_custom_call.1} parent=0
    #allocation4 [shape = 'u8[16384]{0}', space=vmem, size = 0x4000, scoped, tag = 'input window, operand 0, single buffered']
    #allocation5 [shape = 's32[1]{0}', space=sflag, size = 0x4, scoped, tag = 'scoped memory for tpu_custom_call.1']
    #allocation6 [shape = 's32[1]{0}', space=sflag, size = 0x4, scoped, tag = 'scoped memory for tpu_custom_call.1']
    #allocation7 [shape = 'u8[16384]{0}', space=vmem, size = 0x4000, scoped, tag = 'input window, operand 1, single buffered']
    #allocation8 [shape = 's32[1]{0}', space=sflag, size = 0x4, scoped, tag = 'scoped memory for tpu_custom_call.1']
    #allocation9 [shape = 'u8[512]{0}', space=smem, size = 0x200, scoped, tag = 'output window, operand 0, single buffered']
    %7 = vsyncpa [#allocation5], 0
    %8 = vsyncpa [#allocation8], 0
    %9 = vsyncpa [#allocation6], 0
    // Predicated region
    $region2: #{tpu_custom_call.1} parent=1 // pred_check
      _
    $region3: #{tpu_custom_call.1} parent=1 // pred_check_branch
      %11 = sbr.rel (0) target = $region5
    $region4: #{tpu_custom_call.1} parent=1 // pred_region
      %13 = vsyncadd [#allocation5], 0
      %s14 = sshll.u32 %s0, 4
      %s15 = int_to_ptr.hbm [resolvable:$true] %s14
      %s16 = sshll.u32 [#allocation4], 4
      %s17 = int_to_ptr.vmem [resolvable:$true] %s16
      %22 = dma.hbm_to_vmem [thread:$0]  %s15, 512, %s17, [#allocation5], 128, 128, 8
    $region5: #{tpu_custom_call.1} parent=1 // pred_fallthru
      _
    // Predicated region
    $region6: #{tpu_custom_call.1} parent=1 // pred_check
      _
    $region7: #{tpu_custom_call.1} parent=1 // pred_check_branch
      %24 = sbr.rel (0) target = $region9
    $region8: #{tpu_custom_call.1} parent=1 // pred_region
      %26 = vsyncadd [#allocation8], 0
      %s27 = sshll.u32 %s1, 4
      %s28 = int_to_ptr.hbm [resolvable:$true] %s27
      %s29 = sshll.u32 [#allocation7], 4
      %s30 = int_to_ptr.vmem [resolvable:$true] %s29
      %35 = dma.hbm_to_vmem [thread:$0]  %s28, 512, %s30, [#allocation8], 128, 128, 8
    $region9: #{tpu_custom_call.1} parent=1 // pred_fallthru
      _
    // Predicated region
    $region10: #{tpu_custom_call.1} parent=1 // pred_check
      _
    $region11: #{tpu_custom_call.1} parent=1 // pred_check_branch
      %37 = sbr.rel (0) target = $region13
    $region12: #{tpu_custom_call.1} parent=1 // pred_region
      %39 = dma.done [#allocation5], 512
    $region13: #{tpu_custom_call.1} parent=1 // pred_fallthru
      _
    // Predicated region
    $region14: #{tpu_custom_call.1} parent=1 // pred_check
      _
    $region15: #{tpu_custom_call.1} parent=1 // pred_check_branch
      %41 = sbr.rel (0) target = $region17
    $region16: #{tpu_custom_call.1} parent=1 // pred_region
      %43 = dma.done [#allocation8], 512
    $region17: #{tpu_custom_call.1} parent=1 // pred_fallthru
      _
    %p44 = scmp.eq.s32.totalorder 0, 0
    // Predicated region
    $region18: #{tpu_custom_call.1} parent=1 // pred_check
      %p45 = pneg %p44
    $region19: #{tpu_custom_call.1} parent=1 // pred_check_branch
      %47 = sbr.rel (%p45) target = $region21
    $region20: #{tpu_custom_call.1} parent=1 // pred_region
      %vm48 = vcmask 146432
      %49 = vst.msk [vmem:[#allocation2] sm:$0xff] %vm48, 0.0
      %50 = vst.msk [vmem:[#allocation2 + $0x8] sm:$0xff] %vm48, 0.0
      %vm51 = vcmask 140288
      %52 = vst.msk [vmem:[#allocation2 + $0x10] sm:$0x3] %vm51, 0.0
      %53 = vst.msk [vmem:[#allocation2 + $0x18] sm:$0xff] %vm48, 0.0
      %54 = vst.msk [vmem:[#allocation2 + $0x20] sm:$0xff] %vm48, 0.0
      %55 = vst.msk [vmem:[#allocation2 + $0x28] sm:$0x3] %vm51, 0.0
      %vm56 = vcmask 130048
      %57 = vst.msk [vmem:[#allocation3] sm:$0xff] %vm56, 0.0
      %58 = vst.msk [vmem:[#allocation3 + $0x8] sm:$0xff] %vm56, 0.0
    $region21: #{tpu_custom_call.1} parent=1 // pred_fallthru
      _
    %v59 = vld [vmem:[#allocation4] sm:$0xff]
    %v60 = vld [vmem:[#allocation4 + $0x8] sm:$0xff]
    %v61 = vld [vmem:[#allocation4 + $0x10] sm:$0xff]
    %v62 = vld [vmem:[#allocation4 + $0x18] sm:$0xff]
    %v63 = vld [vmem:[#allocation7] sm:$0xff]
    %v64 = vld [vmem:[#allocation7 + $0x8] sm:$0xff]
    %v65 = vld [vmem:[#allocation7 + $0x10] sm:$0xff]
    %v66 = vld [vmem:[#allocation7 + $0x18] sm:$0xff]
    %v67 = vsub.f32 %v59, %v63
    %v68 = vsub.f32 %v60, %v64
    %v69 = vsub.f32 %v61, %v65
    %v70 = vsub.f32 %v62, %v66
    %75 = vrot.lane.b32.xlu0 %v67, 1
    %v76 = vpop.permute.xlu0 %75
    %77 = vrot.lane.b32.xlu0 %v68, 1
    %v78 = vpop.permute.xlu0 %77
    %79 = vrot.lane.b32.xlu0 %v69, 1
    %v80 = vpop.permute.xlu0 %79
    %81 = vrot.lane.b32.xlu0 %v70, 1
    %v82 = vpop.permute.xlu0 %81
    %vm87 = vcmask 138248
    %88 = vst.msk [vmem:[#allocation2 + $0x1] sm:$0xff] %vm87, %v76
    %89 = vst.msk [vmem:[#allocation2 + $0x9] sm:$0xff] %vm87, %v78
    %90 = vst.msk [vmem:[#allocation2 + $0x19] sm:$0xff] %vm87, %v80
    %91 = vst.msk [vmem:[#allocation2 + $0x21] sm:$0xff] %vm87, %v82
    %v92 = vld [vmem:[#allocation2] sm:$0xff]
    %v93 = vld [vmem:[#allocation2 + $0x8] sm:$0xff]
    %v94 = vld [vmem:[#allocation2 + $0x18] sm:$0xff]
    %v95 = vld [vmem:[#allocation2 + $0x20] sm:$0xff]
    %v96 = vld [vmem:[#allocation2 + $0x1] sm:$0xff]
    %v97 = vld [vmem:[#allocation2 + $0x9] sm:$0xff]
    %v98 = vld [vmem:[#allocation2 + $0x19] sm:$0xff]
    %v99 = vld [vmem:[#allocation2 + $0x21] sm:$0xff]
    %v100 = vld [vmem:[#allocation2 + $0x2] sm:$0xff]
    %v101 = vld [vmem:[#allocation2 + $0xa] sm:$0xff]
    %v102 = vld [vmem:[#allocation2 + $0x1a] sm:$0xff]
    %v103 = vld [vmem:[#allocation2 + $0x22] sm:$0xff]
    %v104 = vmul.f32 %v96, 2.0
    %v105 = vmul.f32 %v97, 2.0
    %v106 = vmul.f32 %v98, 2.0
    %v107 = vmul.f32 %v99, 2.0
    %v108 = vadd.f32 %v92, %v104
    %v109 = vadd.f32 %v93, %v105
    %v110 = vadd.f32 %v94, %v106
    %v111 = vadd.f32 %v95, %v107
    %v112 = vadd.f32 %v108, %v100
    %v113 = vadd.f32 %v109, %v101
    %v114 = vadd.f32 %v110, %v102
    %v115 = vadd.f32 %v111, %v103
    %v116 = vsub.f32 %v100, %v92
    %v117 = vsub.f32 %v101, %v93
    %v118 = vsub.f32 %v102, %v94
    %v119 = vsub.f32 %v103, %v95
    %124 = vrot.lane.b32.xlu0 %v112, 2
    %v125 = vpop.permute.xlu0 %124
    %126 = vrot.lane.b32.xlu0 %v113, 2
    %v127 = vpop.permute.xlu0 %126
    %128 = vrot.lane.b32.xlu0 %v114, 2
    %v129 = vpop.permute.xlu0 %128
    %130 = vrot.lane.b32.xlu0 %v115, 2
    %v131 = vpop.permute.xlu0 %130
    %v136 = vsub.f32 %v112, %v125
    %v137 = vsub.f32 %v113, %v127
    %v138 = vsub.f32 %v114, %v129
    %v139 = vsub.f32 %v115, %v131
    %v140 = vmul.f32 %v116, 2.0
    %v141 = vmul.f32 %v117, 2.0
    %v142 = vmul.f32 %v118, 2.0
    %v143 = vmul.f32 %v119, 2.0
    %148 = vrot.lane.b32.xlu0 %v140, 127
    %v149 = vpop.permute.xlu0 %148
    %150 = vrot.lane.b32.xlu0 %v141, 127
    %v151 = vpop.permute.xlu0 %150
    %152 = vrot.lane.b32.xlu0 %v142, 127
    %v153 = vpop.permute.xlu0 %152
    %154 = vrot.lane.b32.xlu0 %v143, 127
    %v155 = vpop.permute.xlu0 %154
    %v160 = vadd.f32 %v116, %v149
    %v161 = vadd.f32 %v117, %v151
    %v162 = vadd.f32 %v118, %v153
    %v163 = vadd.f32 %v119, %v155
    %168 = vrot.lane.b32.xlu0 %v116, 126
    %v169 = vpop.permute.xlu0 %168
    %170 = vrot.lane.b32.xlu0 %v117, 126
    %v171 = vpop.permute.xlu0 %170
    %172 = vrot.lane.b32.xlu0 %v118, 126
    %v173 = vpop.permute.xlu0 %172
    %174 = vrot.lane.b32.xlu0 %v119, 126
    %v175 = vpop.permute.xlu0 %174
    %v180 = vadd.f32 %v160, %v169
    %v181 = vadd.f32 %v161, %v171
    %v182 = vadd.f32 %v162, %v173
    %v183 = vadd.f32 %v163, %v175
    %v184 = vld [vmem:[#allocation3] sm:$0xff]
    %v185 = vld [vmem:[#allocation3 + $0x8] sm:$0xff]
    %v186 = vmul.f32 %v136, %v136
    %v187 = vmul.f32 %v137, %v137
    %v188 = vmul.f32 %v138, %v138
    %v189 = vmul.f32 %v139, %v139
    %v190 = vmul.f32 %v180, %v180
    %v191 = vmul.f32 %v181, %v181
    %v192 = vmul.f32 %v182, %v182
    %v193 = vmul.f32 %v183, %v183
    %198 = vrot.lane.b32.xlu0 %v190, 2
    %v199 = vpop.permute.xlu0 %198
    %200 = vrot.lane.b32.xlu0 %v191, 2
    %v201 = vpop.permute.xlu0 %200
    %202 = vrot.lane.b32.xlu0 %v192, 2
    %v203 = vpop.permute.xlu0 %202
    %204 = vrot.lane.b32.xlu0 %v193, 2
    %v205 = vpop.permute.xlu0 %204
    %v210 = vadd.f32 %v186, %v199
    %v211 = vadd.f32 %v187, %v201
    %v212 = vadd.f32 %v188, %v203
    %v213 = vadd.f32 %v189, %v205
    %vm214 = vcmask 146448
    %v215 = vsel %vm214, %v210, 0.0
    %v216 = vsel %vm214, %v212, 0.0
    %v217 = vadd.f32 %v215, %v216
    %v218 = vsel %vm214, %v211, 0.0
    %v219 = vsel %vm214, %v213, 0.0
    %v220 = vadd.f32 %v218, %v219
    %223 = vrot.lane.b32.xlu0 %v217, 126
    %v224 = vpop.permute.xlu0 %223
    %225 = vrot.lane.b32.xlu0 %v220, 126
    %v226 = vpop.permute.xlu0 %225
    %v229 = vadd.f32 %v184, %v224
    %v230 = vadd.f32 %v185, %v226
    %vm231 = vcmask 130048
    %232 = vst.msk [vmem:[#allocation3] sm:$0xff] %vm231, %v229
    %233 = vst.msk [vmem:[#allocation3 + $0x8] sm:$0xff] %vm231, %v230
    // Predicated region
    $region22: #{tpu_custom_call.1} parent=1 // pred_check
      %p234 = pneg %p44
    $region23: #{tpu_custom_call.1} parent=1 // pred_check_branch
      %236 = sbr.rel (%p234) target = $region25
    $region24: #{tpu_custom_call.1} parent=1 // pred_region
      %v237 = vld [vmem:[#allocation3] sm:$0xff]
      %v238 = vld [vmem:[#allocation3 + $0x8] sm:$0xff]
      %v239 = vsel %vm231, %v237, 0.0
      %v240 = vsel %vm231, %v238, 0.0
      %v241 = vadd.f32 %v239, %v240
      %242 = vadd.xlane.f32.xlu0 %v241
      %v243 = vpop.xlane.xlu0 %242
      %v244 = vrot.slane %v243, 4
      %v245 = vadd.f32 %v243, %v244
      %v246 = vrot.slane %v245, 2
      %v247 = vadd.f32 %v245, %v246
      %v248 = vrot.slane %v247, 1
      %v249 = vadd.f32 %v247, %v248
      %s250 = vtos %v249
      %s251 = smul.f32 %s250, 0.001953125
      %s252 = scalar_lea.smem [#allocation9], 0
      %253 = sst [smem:[%s252]] %s251
    $region25: #{tpu_custom_call.1} parent=1 // pred_fallthru
      _
    // Predicated region
    $region26: #{tpu_custom_call.1} parent=1 // pred_check
      _
    $region27: #{tpu_custom_call.1} parent=1 // pred_check_branch
      %255 = sbr.rel (0) target = $region29
    $region28: #{tpu_custom_call.1} parent=1 // pred_region
      %257 = vsyncadd [#allocation6], 0
      %s259 = sshll.u32 %s2, 4
      %s260 = int_to_ptr.hbm [resolvable:$true] %s259
      %262 = dma.smem_to_hbm [#allocation9], 16, %s260, [#allocation6]
    $region29: #{tpu_custom_call.1} parent=1 // pred_fallthru
      _
    // Predicated region
    $region30: #{tpu_custom_call.1} parent=1 // pred_check
      _
    $region31: #{tpu_custom_call.1} parent=1 // pred_check_branch
      %264 = sbr.rel (0) target = $region33
    $region32: #{tpu_custom_call.1} parent=1 // pred_region
      %266 = dma.done [#allocation6], 16
    $region33: #{tpu_custom_call.1} parent=1 // pred_fallthru
      _
    %267 = sfence
    %268 = vsyncpa [#allocation5], 1
    %269 = vsyncpa [#allocation8], 1
    %270 = vsyncpa [#allocation6], 1

</llo_original>
